<compile_context>
chip_gen: v6e
topology: v6e:2x2x1
jax: 0.10.0
libtpu: 0.0.40
codegen_flags: <defaults>
</compile_context>

<pallas_src>
import functools

import jax
import jax.numpy as jnp
from jax import lax
from jax.experimental import pallas as pl
from jax.experimental.pallas import tpu as pltpu

# Packed-parameter layout (flattened row-major, PyTorch (out, in) weights).
# Layer-3 weight/bias are stored NEGATED (sigmoid-negation folding).
_W1_OFF, _B1_OFF = 0, 52        # w1: (4, 13) -> 52 ; b1: (4,)
_W2_OFF, _B2_OFF = 56, 72       # w2: (4, 4)  -> 16 ; b2: (4,)
_W3N_OFF, _B3N_OFF = 76, 80     # -w3: (1, 4) -> 4  ; -b3: (1,)
_N_PARAMS = 81
_PARAM_PAD = 128                # pad the flat param vector to a tidy SMEM slab

_LANES = 128                    # vreg lane width
_CHUNK_SUBLANES = 16            # inner-loop chunk: 16 sublane rows = 2048 rows
_ROW_QUANT = _CHUNK_SUBLANES * _LANES   # 2048-row batch quantum
_MAX_TILE_ROWS = 65536          # per-grid-step tile (3.25 MiB x tile, 2x buffered)
_TARGET_GRID_STEPS = 4          # keep >= 4 steps so v7x megacore can split work
_EXP_CLAMP = 80.0               # exp(80) is finite in f32 -> no inf into vrcp


def _cdiv(a, b):
    return -(-a // b)


def _choose_tiling(batch, max_tile_rows):
    """Pick (tile_rows, grid_steps, padded_batch).

    Tiles are as large as possible (amortizes the ~0.35us per-grid-step cost)
    but the grid keeps >= _TARGET_GRID_STEPS steps when the batch allows it
    (v7x megacore), and padding stays near the 2048-row quantum.
    """
    quanta = max(1, _cdiv(batch, _ROW_QUANT))
    max_tile_quanta = max(1, max_tile_rows // _ROW_QUANT)
    steps = max(min(_TARGET_GRID_STEPS, quanta), _cdiv(quanta, max_tile_quanta))
    tile_quanta = _cdiv(quanta, steps)
    padded = steps * tile_quanta * _ROW_QUANT
    return tile_quanta * _ROW_QUANT, steps, padded


def mlp_kernel(p_ref, x_ref, o_ref):
    """Fused 13 -> 4 -> 4 -> 1 MLP on one batch tile.

    p_ref : f32[128] in SMEM  -- packed w1,b1,w2,b2,-w3,-b3 (PyTorch (out,in)).
    x_ref : f32[13, S, 128]   -- feature-major batch tile (S*128 batch rows).
    o_ref : f32[S, 128]       -- sigmoid output for the same batch rows.

    Strip-mined over the sublane axis in 16-row chunks so only ~25 vregs are
    live at a time, letting the BlockSpec tile grow to 64K rows without spills.
    """
    n_chunks = x_ref.shape[1] // _CHUNK_SUBLANES

    def dense(rows, n_in, n_out, w_off, b_off, relu):
        # y[o] = act( sum_i w[o, i] * rows[i] + b[o] ): scalar-broadcast FMAs on
        # the VPU.  (The MXU is useless here: K=13/4 padded to 128 wastes it.)
        outs = []
        for o in range(n_out):
            acc = rows[0] * p_ref[w_off + o * n_in]
            for i in range(1, n_in):
                acc = acc + rows[i] * p_ref[w_off + o * n_in + i]
            acc = acc + p_ref[b_off + o]
            outs.append(jnp.maximum(acc, 0.0) if relu else acc)
        return outs

    def chunk(c, carry):
        off = pl.multiple_of(c * _CHUNK_SUBLANES, _CHUNK_SUBLANES)
        x_rows = [x_ref[f, pl.ds(off, _CHUNK_SUBLANES), :] for f in range(13)]
        h1 = dense(x_rows, 13, 4, _W1_OFF, _B1_OFF, relu=True)
        h2 = dense(h1, 4, 4, _W2_OFF, _B2_OFF, relu=True)
        # z = -(w3 . h2 + b3): negation folded into the packed params.
        (z,) = dense(h2, 4, 1, _W3N_OFF, _B3N_OFF, relu=False)
        # sigmoid(w3.h2 + b3) = 1 / (1 + exp(z)); clamp keeps exp finite so the
        # approximate (EUP) reciprocal never sees inf.  exp + vrcp: EUP slot.
        z = jnp.minimum(z, _EXP_CLAMP)
        o_ref[pl.ds(off, _CHUNK_SUBLANES), :] = pl.reciprocal(
            1.0 + jnp.exp(z), approx=True)
        return carry

    lax.fori_loop(0, n_chunks, chunk, 0)


def pack_params(params):
    """Flatten all weights/biases into one f32[128] vector (SMEM resident).

    fc3's weight and bias are negated so the kernel folds the sigmoid negation.
    """
    flat = jnp.concatenate([
        params["w1"].reshape(-1).astype(jnp.float32),
        params["b1"].reshape(-1).astype(jnp.float32),
        params["w2"].reshape(-1).astype(jnp.float32),
        params["b2"].reshape(-1).astype(jnp.float32),
        (-params["w3"]).reshape(-1).astype(jnp.float32),
        (-params["b3"]).reshape(-1).astype(jnp.float32),
    ])
    return jnp.pad(flat, (0, _PARAM_PAD - _N_PARAMS))


@functools.partial(jax.jit, static_argnames=("max_tile_rows",))
def net_forward(x, params, *, max_tile_rows=_MAX_TILE_ROWS):
    """x: (B, 13) float32 -> (B, 1) float32, same semantics as the PyTorch Net."""
    batch = x.shape[0]
    tile_rows, steps, padded = _choose_tiling(batch, max_tile_rows)
    s = tile_rows // _LANES          # sublane rows per tile
    r = padded // _LANES             # total sublane rows

    # One fused relayout pass in XLA: pad the batch to the 2048-row quantum and
    # put features on the leading axis, batch on (sublane, lane).  See header
    # comment for why this single pass beats the in-kernel relayout options.
    xp = x.astype(jnp.float32)
    if padded != batch:
        xp = jnp.pad(xp, ((0, padded - batch), (0, 0)))
    xt = xp.T.reshape(13, r, _LANES)                # (13, r, 128) slab

    p = pack_params(params)

    out = pl.pallas_call(
        mlp_kernel,
        out_shape=jax.ShapeDtypeStruct((r, _LANES), jnp.float32),
        grid=(steps,),
        in_specs=[
            # Packed parameters: one small resident SMEM buffer.
            pl.BlockSpec(memory_space=pltpu.MemorySpace.SMEM),
            # x tile (13, S, 128): double-buffered by the BlockSpec pipeline.
            pl.BlockSpec((13, s, _LANES), lambda i: (0, i, 0)),
        ],
        # Lane- and sublane-dense output slab.
        out_specs=pl.BlockSpec((s, _LANES), lambda i: (i, 0)),
        compiler_params=pltpu.CompilerParams(
            dimension_semantics=("parallel",),
        ),
    )(p, xt)

    # Back to the PyTorch (B, 1) layout.
    return out.reshape(padded)[:batch].reshape(batch, 1)


def init_params(key):
    """PyTorch-style Linear init: U(-1/sqrt(fan_in), 1/sqrt(fan_in)), (out,in)."""
    def linear(k, fan_in, fan_out):
        kw, kb = jax.random.split(k)
        bound = 1.0 / jnp.sqrt(jnp.float32(fan_in))
        w = jax.random.uniform(kw, (fan_out, fan_in), jnp.float32, -bound, bound)
        b = jax.random.uniform(kb, (fan_out,), jnp.float32, -bound, bound)
        return w, b

    k1, k2, k3 = jax.random.split(key, 3)
    w1, b1 = linear(k1, 13, 4)
    w2, b2 = linear(k2, 4, 4)
    w3, b3 = linear(k3, 4, 1)
    return {"w1": w1, "b1": b1, "w2": w2, "b2": b2, "w3": w3, "b3": b3}


def net_forward_ref(x, p):
    h1 = jnp.maximum(x @ p["w1"].T + p["b1"], 0.0)
    h2 = jnp.maximum(h1 @ p["w2"].T + p["b2"], 0.0)
    return jax.nn.sigmoid(h2 @ p["w3"].T + p["b3"])


if __name__ == "__main__":
    key = jax.random.PRNGKey(0)
    kx, kp = jax.random.split(key)
    params = init_params(kp)

    # Exercise: tiny batch, padded batch, and a ragged multi-grid-step batch.
    for B in (8, 200, 4219):
        x = jax.random.normal(jax.random.fold_in(kx, B), (B, 13), jnp.float32)
        out = net_forward(x, params)
        jax.block_until_ready(out)

        ref = net_forward_ref(x, params)
        assert out.shape == (B, 1), out.shape
        # Tolerance accounts for the approximate (EUP) reciprocal in the sigmoid.
        assert jnp.allclose(out, ref, atol=2e-3, rtol=2e-3), (
            float(jnp.max(jnp.abs(out - ref))))

    print("KERNEL_OK")
</pallas_src>

<mosaic_0001>
module attributes {stable_mosaic.version = 11 : i64} {
  func.func @mlp_kernel(%arg0: i32, %arg1: memref<128xf32, #tpu.memory_space<smem>>, %arg2: memref<13x16x128xf32, #tpu.memory_space<vmem>>, %arg3: memref<16x128xf32, #tpu.memory_space<vmem>>) attributes {dimension_semantics = [#tpu.dimension_semantics<parallel>], iteration_bounds = array<i64: 1>, scalar_prefetch = 0 : i64, scratch_operands = 0 : i64, tpu.core_type = #tpu.core_type<tc>, window_params = [{transform_indices = @transform_0, window_bounds = array<i64: 128>}, {transform_indices = @transform_1, window_bounds = array<i64: 13, 16, 128>}, {transform_indices = @transform_2, window_bounds = array<i64: 16, 128>}]} {
    %c0_i32 = arith.constant 0 : i32
    %c16_i32 = arith.constant 16 : i32
    %0 = arith.muli %c0_i32, %c16_i32 : i32
    %1 = tpu.assume_multiple %0, 16 : i32
    %c0 = arith.constant 0 : index
    %2 = arith.index_cast %1 : i32 to index
    %c0_0 = arith.constant 0 : index
    %3 = vector.load %arg2[%c0, %2, %c0_0] : memref<13x16x128xf32, #tpu.memory_space<vmem>>, vector<1x16x128xf32>
    %4 = vector.shape_cast %3 : vector<1x16x128xf32> to vector<16x128xf32>
    %c1 = arith.constant 1 : index
    %5 = arith.index_cast %1 : i32 to index
    %c0_1 = arith.constant 0 : index
    %6 = vector.load %arg2[%c1, %5, %c0_1] : memref<13x16x128xf32, #tpu.memory_space<vmem>>, vector<1x16x128xf32>
    %7 = vector.shape_cast %6 : vector<1x16x128xf32> to vector<16x128xf32>
    %c2 = arith.constant 2 : index
    %8 = arith.index_cast %1 : i32 to index
    %c0_2 = arith.constant 0 : index
    %9 = vector.load %arg2[%c2, %8, %c0_2] : memref<13x16x128xf32, #tpu.memory_space<vmem>>, vector<1x16x128xf32>
    %10 = vector.shape_cast %9 : vector<1x16x128xf32> to vector<16x128xf32>
    %c3 = arith.constant 3 : index
    %11 = arith.index_cast %1 : i32 to index
    %c0_3 = arith.constant 0 : index
    %12 = vector.load %arg2[%c3, %11, %c0_3] : memref<13x16x128xf32, #tpu.memory_space<vmem>>, vector<1x16x128xf32>
    %13 = vector.shape_cast %12 : vector<1x16x128xf32> to vector<16x128xf32>
    %c4 = arith.constant 4 : index
    %14 = arith.index_cast %1 : i32 to index
    %c0_4 = arith.constant 0 : index
    %15 = vector.load %arg2[%c4, %14, %c0_4] : memref<13x16x128xf32, #tpu.memory_space<vmem>>, vector<1x16x128xf32>
    %16 = vector.shape_cast %15 : vector<1x16x128xf32> to vector<16x128xf32>
    %c5 = arith.constant 5 : index
    %17 = arith.index_cast %1 : i32 to index
    %c0_5 = arith.constant 0 : index
    %18 = vector.load %arg2[%c5, %17, %c0_5] : memref<13x16x128xf32, #tpu.memory_space<vmem>>, vector<1x16x128xf32>
    %19 = vector.shape_cast %18 : vector<1x16x128xf32> to vector<16x128xf32>
    %c6 = arith.constant 6 : index
    %20 = arith.index_cast %1 : i32 to index
    %c0_6 = arith.constant 0 : index
    %21 = vector.load %arg2[%c6, %20, %c0_6] : memref<13x16x128xf32, #tpu.memory_space<vmem>>, vector<1x16x128xf32>
    %22 = vector.shape_cast %21 : vector<1x16x128xf32> to vector<16x128xf32>
    %c7 = arith.constant 7 : index
    %23 = arith.index_cast %1 : i32 to index
    %c0_7 = arith.constant 0 : index
    %24 = vector.load %arg2[%c7, %23, %c0_7] : memref<13x16x128xf32, #tpu.memory_space<vmem>>, vector<1x16x128xf32>
    %25 = vector.shape_cast %24 : vector<1x16x128xf32> to vector<16x128xf32>
    %c8 = arith.constant 8 : index
    %26 = arith.index_cast %1 : i32 to index
    %c0_8 = arith.constant 0 : index
    %27 = vector.load %arg2[%c8, %26, %c0_8] : memref<13x16x128xf32, #tpu.memory_space<vmem>>, vector<1x16x128xf32>
    %28 = vector.shape_cast %27 : vector<1x16x128xf32> to vector<16x128xf32>
    %c9 = arith.constant 9 : index
    %29 = arith.index_cast %1 : i32 to index
    %c0_9 = arith.constant 0 : index
    %30 = vector.load %arg2[%c9, %29, %c0_9] : memref<13x16x128xf32, #tpu.memory_space<vmem>>, vector<1x16x128xf32>
    %31 = vector.shape_cast %30 : vector<1x16x128xf32> to vector<16x128xf32>
    %c10 = arith.constant 10 : index
    %32 = arith.index_cast %1 : i32 to index
    %c0_10 = arith.constant 0 : index
    %33 = vector.load %arg2[%c10, %32, %c0_10] : memref<13x16x128xf32, #tpu.memory_space<vmem>>, vector<1x16x128xf32>
    %34 = vector.shape_cast %33 : vector<1x16x128xf32> to vector<16x128xf32>
    %c11 = arith.constant 11 : index
    %35 = arith.index_cast %1 : i32 to index
    %c0_11 = arith.constant 0 : index
    %36 = vector.load %arg2[%c11, %35, %c0_11] : memref<13x16x128xf32, #tpu.memory_space<vmem>>, vector<1x16x128xf32>
    %37 = vector.shape_cast %36 : vector<1x16x128xf32> to vector<16x128xf32>
    %c12 = arith.constant 12 : index
    %38 = arith.index_cast %1 : i32 to index
    %c0_12 = arith.constant 0 : index
    %39 = vector.load %arg2[%c12, %38, %c0_12] : memref<13x16x128xf32, #tpu.memory_space<vmem>>, vector<1x16x128xf32>
    %40 = vector.shape_cast %39 : vector<1x16x128xf32> to vector<16x128xf32>
    %c0_13 = arith.constant 0 : index
    %41 = memref.load %arg1[%c0_13] : memref<128xf32, #tpu.memory_space<smem>>
    %42 = vector.broadcast %41 : f32 to vector<16x128xf32>
    %43 = arith.mulf %4, %42 : vector<16x128xf32>
    %c1_14 = arith.constant 1 : index
    %44 = memref.load %arg1[%c1_14] : memref<128xf32, #tpu.memory_space<smem>>
    %45 = vector.broadcast %44 : f32 to vector<16x128xf32>
    %46 = arith.mulf %7, %45 : vector<16x128xf32>
    %47 = arith.addf %43, %46 : vector<16x128xf32>
    %c2_15 = arith.constant 2 : index
    %48 = memref.load %arg1[%c2_15] : memref<128xf32, #tpu.memory_space<smem>>
    %49 = vector.broadcast %48 : f32 to vector<16x128xf32>
    %50 = arith.mulf %10, %49 : vector<16x128xf32>
    %51 = arith.addf %47, %50 : vector<16x128xf32>
    %c3_16 = arith.constant 3 : index
    %52 = memref.load %arg1[%c3_16] : memref<128xf32, #tpu.memory_space<smem>>
    %53 = vector.broadcast %52 : f32 to vector<16x128xf32>
    %54 = arith.mulf %13, %53 : vector<16x128xf32>
    %55 = arith.addf %51, %54 : vector<16x128xf32>
    %c4_17 = arith.constant 4 : index
    %56 = memref.load %arg1[%c4_17] : memref<128xf32, #tpu.memory_space<smem>>
    %57 = vector.broadcast %56 : f32 to vector<16x128xf32>
    %58 = arith.mulf %16, %57 : vector<16x128xf32>
    %59 = arith.addf %55, %58 : vector<16x128xf32>
    %c5_18 = arith.constant 5 : index
    %60 = memref.load %arg1[%c5_18] : memref<128xf32, #tpu.memory_space<smem>>
    %61 = vector.broadcast %60 : f32 to vector<16x128xf32>
    %62 = arith.mulf %19, %61 : vector<16x128xf32>
    %63 = arith.addf %59, %62 : vector<16x128xf32>
    %c6_19 = arith.constant 6 : index
    %64 = memref.load %arg1[%c6_19] : memref<128xf32, #tpu.memory_space<smem>>
    %65 = vector.broadcast %64 : f32 to vector<16x128xf32>
    %66 = arith.mulf %22, %65 : vector<16x128xf32>
    %67 = arith.addf %63, %66 : vector<16x128xf32>
    %c7_20 = arith.constant 7 : index
    %68 = memref.load %arg1[%c7_20] : memref<128xf32, #tpu.memory_space<smem>>
    %69 = vector.broadcast %68 : f32 to vector<16x128xf32>
    %70 = arith.mulf %25, %69 : vector<16x128xf32>
    %71 = arith.addf %67, %70 : vector<16x128xf32>
    %c8_21 = arith.constant 8 : index
    %72 = memref.load %arg1[%c8_21] : memref<128xf32, #tpu.memory_space<smem>>
    %73 = vector.broadcast %72 : f32 to vector<16x128xf32>
    %74 = arith.mulf %28, %73 : vector<16x128xf32>
    %75 = arith.addf %71, %74 : vector<16x128xf32>
    %c9_22 = arith.constant 9 : index
    %76 = memref.load %arg1[%c9_22] : memref<128xf32, #tpu.memory_space<smem>>
    %77 = vector.broadcast %76 : f32 to vector<16x128xf32>
    %78 = arith.mulf %31, %77 : vector<16x128xf32>
    %79 = arith.addf %75, %78 : vector<16x128xf32>
    %c10_23 = arith.constant 10 : index
    %80 = memref.load %arg1[%c10_23] : memref<128xf32, #tpu.memory_space<smem>>
    %81 = vector.broadcast %80 : f32 to vector<16x128xf32>
    %82 = arith.mulf %34, %81 : vector<16x128xf32>
    %83 = arith.addf %79, %82 : vector<16x128xf32>
    %c11_24 = arith.constant 11 : index
    %84 = memref.load %arg1[%c11_24] : memref<128xf32, #tpu.memory_space<smem>>
    %85 = vector.broadcast %84 : f32 to vector<16x128xf32>
    %86 = arith.mulf %37, %85 : vector<16x128xf32>
    %87 = arith.addf %83, %86 : vector<16x128xf32>
    %c12_25 = arith.constant 12 : index
    %88 = memref.load %arg1[%c12_25] : memref<128xf32, #tpu.memory_space<smem>>
    %89 = vector.broadcast %88 : f32 to vector<16x128xf32>
    %90 = arith.mulf %40, %89 : vector<16x128xf32>
    %91 = arith.addf %87, %90 : vector<16x128xf32>
    %c52 = arith.constant 52 : index
    %92 = memref.load %arg1[%c52] : memref<128xf32, #tpu.memory_space<smem>>
    %93 = vector.broadcast %92 : f32 to vector<16x128xf32>
    %94 = arith.addf %91, %93 : vector<16x128xf32>
    %cst = arith.constant 0.000000e+00 : f32
    %95 = vector.broadcast %cst : f32 to vector<16x128xf32>
    %96 = arith.maximumf %94, %95 : vector<16x128xf32>
    %c13 = arith.constant 13 : index
    %97 = memref.load %arg1[%c13] : memref<128xf32, #tpu.memory_space<smem>>
    %98 = vector.broadcast %97 : f32 to vector<16x128xf32>
    %99 = arith.mulf %4, %98 : vector<16x128xf32>
    %c14 = arith.constant 14 : index
    %100 = memref.load %arg1[%c14] : memref<128xf32, #tpu.memory_space<smem>>
    %101 = vector.broadcast %100 : f32 to vector<16x128xf32>
    %102 = arith.mulf %7, %101 : vector<16x128xf32>
    %103 = arith.addf %99, %102 : vector<16x128xf32>
    %c15 = arith.constant 15 : index
    %104 = memref.load %arg1[%c15] : memref<128xf32, #tpu.memory_space<smem>>
    %105 = vector.broadcast %104 : f32 to vector<16x128xf32>
    %106 = arith.mulf %10, %105 : vector<16x128xf32>
    %107 = arith.addf %103, %106 : vector<16x128xf32>
    %c16 = arith.constant 16 : index
    %108 = memref.load %arg1[%c16] : memref<128xf32, #tpu.memory_space<smem>>
    %109 = vector.broadcast %108 : f32 to vector<16x128xf32>
    %110 = arith.mulf %13, %109 : vector<16x128xf32>
    %111 = arith.addf %107, %110 : vector<16x128xf32>
    %c17 = arith.constant 17 : index
    %112 = memref.load %arg1[%c17] : memref<128xf32, #tpu.memory_space<smem>>
    %113 = vector.broadcast %112 : f32 to vector<16x128xf32>
    %114 = arith.mulf %16, %113 : vector<16x128xf32>
    %115 = arith.addf %111, %114 : vector<16x128xf32>
    %c18 = arith.constant 18 : index
    %116 = memref.load %arg1[%c18] : memref<128xf32, #tpu.memory_space<smem>>
    %117 = vector.broadcast %116 : f32 to vector<16x128xf32>
    %118 = arith.mulf %19, %117 : vector<16x128xf32>
    %119 = arith.addf %115, %118 : vector<16x128xf32>
    %c19 = arith.constant 19 : index
    %120 = memref.load %arg1[%c19] : memref<128xf32, #tpu.memory_space<smem>>
    %121 = vector.broadcast %120 : f32 to vector<16x128xf32>
    %122 = arith.mulf %22, %121 : vector<16x128xf32>
    %123 = arith.addf %119, %122 : vector<16x128xf32>
    %c20 = arith.constant 20 : index
    %124 = memref.load %arg1[%c20] : memref<128xf32, #tpu.memory_space<smem>>
    %125 = vector.broadcast %124 : f32 to vector<16x128xf32>
    %126 = arith.mulf %25, %125 : vector<16x128xf32>
    %127 = arith.addf %123, %126 : vector<16x128xf32>
    %c21 = arith.constant 21 : index
    %128 = memref.load %arg1[%c21] : memref<128xf32, #tpu.memory_space<smem>>
    %129 = vector.broadcast %128 : f32 to vector<16x128xf32>
    %130 = arith.mulf %28, %129 : vector<16x128xf32>
    %131 = arith.addf %127, %130 : vector<16x128xf32>
    %c22 = arith.constant 22 : index
    %132 = memref.load %arg1[%c22] : memref<128xf32, #tpu.memory_space<smem>>
    %133 = vector.broadcast %132 : f32 to vector<16x128xf32>
    %134 = arith.mulf %31, %133 : vector<16x128xf32>
    %135 = arith.addf %131, %134 : vector<16x128xf32>
    %c23 = arith.constant 23 : index
    %136 = memref.load %arg1[%c23] : memref<128xf32, #tpu.memory_space<smem>>
    %137 = vector.broadcast %136 : f32 to vector<16x128xf32>
    %138 = arith.mulf %34, %137 : vector<16x128xf32>
    %139 = arith.addf %135, %138 : vector<16x128xf32>
    %c24 = arith.constant 24 : index
    %140 = memref.load %arg1[%c24] : memref<128xf32, #tpu.memory_space<smem>>
    %141 = vector.broadcast %140 : f32 to vector<16x128xf32>
    %142 = arith.mulf %37, %141 : vector<16x128xf32>
    %143 = arith.addf %139, %142 : vector<16x128xf32>
    %c25 = arith.constant 25 : index
    %144 = memref.load %arg1[%c25] : memref<128xf32, #tpu.memory_space<smem>>
    %145 = vector.broadcast %144 : f32 to vector<16x128xf32>
    %146 = arith.mulf %40, %145 : vector<16x128xf32>
    %147 = arith.addf %143, %146 : vector<16x128xf32>
    %c53 = arith.constant 53 : index
    %148 = memref.load %arg1[%c53] : memref<128xf32, #tpu.memory_space<smem>>
    %149 = vector.broadcast %148 : f32 to vector<16x128xf32>
    %150 = arith.addf %147, %149 : vector<16x128xf32>
    %cst_26 = arith.constant 0.000000e+00 : f32
    %151 = vector.broadcast %cst_26 : f32 to vector<16x128xf32>
    %152 = arith.maximumf %150, %151 : vector<16x128xf32>
    %c26 = arith.constant 26 : index
    %153 = memref.load %arg1[%c26] : memref<128xf32, #tpu.memory_space<smem>>
    %154 = vector.broadcast %153 : f32 to vector<16x128xf32>
    %155 = arith.mulf %4, %154 : vector<16x128xf32>
    %c27 = arith.constant 27 : index
    %156 = memref.load %arg1[%c27] : memref<128xf32, #tpu.memory_space<smem>>
    %157 = vector.broadcast %156 : f32 to vector<16x128xf32>
    %158 = arith.mulf %7, %157 : vector<16x128xf32>
    %159 = arith.addf %155, %158 : vector<16x128xf32>
    %c28 = arith.constant 28 : index
    %160 = memref.load %arg1[%c28] : memref<128xf32, #tpu.memory_space<smem>>
    %161 = vector.broadcast %160 : f32 to vector<16x128xf32>
    %162 = arith.mulf %10, %161 : vector<16x128xf32>
    %163 = arith.addf %159, %162 : vector<16x128xf32>
    %c29 = arith.constant 29 : index
    %164 = memref.load %arg1[%c29] : memref<128xf32, #tpu.memory_space<smem>>
    %165 = vector.broadcast %164 : f32 to vector<16x128xf32>
    %166 = arith.mulf %13, %165 : vector<16x128xf32>
    %167 = arith.addf %163, %166 : vector<16x128xf32>
    %c30 = arith.constant 30 : index
    %168 = memref.load %arg1[%c30] : memref<128xf32, #tpu.memory_space<smem>>
    %169 = vector.broadcast %168 : f32 to vector<16x128xf32>
    %170 = arith.mulf %16, %169 : vector<16x128xf32>
    %171 = arith.addf %167, %170 : vector<16x128xf32>
    %c31 = arith.constant 31 : index
    %172 = memref.load %arg1[%c31] : memref<128xf32, #tpu.memory_space<smem>>
    %173 = vector.broadcast %172 : f32 to vector<16x128xf32>
    %174 = arith.mulf %19, %173 : vector<16x128xf32>
    %175 = arith.addf %171, %174 : vector<16x128xf32>
    %c32 = arith.constant 32 : index
    %176 = memref.load %arg1[%c32] : memref<128xf32, #tpu.memory_space<smem>>
    %177 = vector.broadcast %176 : f32 to vector<16x128xf32>
    %178 = arith.mulf %22, %177 : vector<16x128xf32>
    %179 = arith.addf %175, %178 : vector<16x128xf32>
    %c33 = arith.constant 33 : index
    %180 = memref.load %arg1[%c33] : memref<128xf32, #tpu.memory_space<smem>>
    %181 = vector.broadcast %180 : f32 to vector<16x128xf32>
    %182 = arith.mulf %25, %181 : vector<16x128xf32>
    %183 = arith.addf %179, %182 : vector<16x128xf32>
    %c34 = arith.constant 34 : index
    %184 = memref.load %arg1[%c34] : memref<128xf32, #tpu.memory_space<smem>>
    %185 = vector.broadcast %184 : f32 to vector<16x128xf32>
    %186 = arith.mulf %28, %185 : vector<16x128xf32>
    %187 = arith.addf %183, %186 : vector<16x128xf32>
    %c35 = arith.constant 35 : index
    %188 = memref.load %arg1[%c35] : memref<128xf32, #tpu.memory_space<smem>>
    %189 = vector.broadcast %188 : f32 to vector<16x128xf32>
    %190 = arith.mulf %31, %189 : vector<16x128xf32>
    %191 = arith.addf %187, %190 : vector<16x128xf32>
    %c36 = arith.constant 36 : index
    %192 = memref.load %arg1[%c36] : memref<128xf32, #tpu.memory_space<smem>>
    %193 = vector.broadcast %192 : f32 to vector<16x128xf32>
    %194 = arith.mulf %34, %193 : vector<16x128xf32>
    %195 = arith.addf %191, %194 : vector<16x128xf32>
    %c37 = arith.constant 37 : index
    %196 = memref.load %arg1[%c37] : memref<128xf32, #tpu.memory_space<smem>>
    %197 = vector.broadcast %196 : f32 to vector<16x128xf32>
    %198 = arith.mulf %37, %197 : vector<16x128xf32>
    %199 = arith.addf %195, %198 : vector<16x128xf32>
    %c38 = arith.constant 38 : index
    %200 = memref.load %arg1[%c38] : memref<128xf32, #tpu.memory_space<smem>>
    %201 = vector.broadcast %200 : f32 to vector<16x128xf32>
    %202 = arith.mulf %40, %201 : vector<16x128xf32>
    %203 = arith.addf %199, %202 : vector<16x128xf32>
    %c54 = arith.constant 54 : index
    %204 = memref.load %arg1[%c54] : memref<128xf32, #tpu.memory_space<smem>>
    %205 = vector.broadcast %204 : f32 to vector<16x128xf32>
    %206 = arith.addf %203, %205 : vector<16x128xf32>
    %cst_27 = arith.constant 0.000000e+00 : f32
    %207 = vector.broadcast %cst_27 : f32 to vector<16x128xf32>
    %208 = arith.maximumf %206, %207 : vector<16x128xf32>
    %c39 = arith.constant 39 : index
    %209 = memref.load %arg1[%c39] : memref<128xf32, #tpu.memory_space<smem>>
    %210 = vector.broadcast %209 : f32 to vector<16x128xf32>
    %211 = arith.mulf %4, %210 : vector<16x128xf32>
    %c40 = arith.constant 40 : index
    %212 = memref.load %arg1[%c40] : memref<128xf32, #tpu.memory_space<smem>>
    %213 = vector.broadcast %212 : f32 to vector<16x128xf32>
    %214 = arith.mulf %7, %213 : vector<16x128xf32>
    %215 = arith.addf %211, %214 : vector<16x128xf32>
    %c41 = arith.constant 41 : index
    %216 = memref.load %arg1[%c41] : memref<128xf32, #tpu.memory_space<smem>>
    %217 = vector.broadcast %216 : f32 to vector<16x128xf32>
    %218 = arith.mulf %10, %217 : vector<16x128xf32>
    %219 = arith.addf %215, %218 : vector<16x128xf32>
    %c42 = arith.constant 42 : index
    %220 = memref.load %arg1[%c42] : memref<128xf32, #tpu.memory_space<smem>>
    %221 = vector.broadcast %220 : f32 to vector<16x128xf32>
    %222 = arith.mulf %13, %221 : vector<16x128xf32>
    %223 = arith.addf %219, %222 : vector<16x128xf32>
    %c43 = arith.constant 43 : index
    %224 = memref.load %arg1[%c43] : memref<128xf32, #tpu.memory_space<smem>>
    %225 = vector.broadcast %224 : f32 to vector<16x128xf32>
    %226 = arith.mulf %16, %225 : vector<16x128xf32>
    %227 = arith.addf %223, %226 : vector<16x128xf32>
    %c44 = arith.constant 44 : index
    %228 = memref.load %arg1[%c44] : memref<128xf32, #tpu.memory_space<smem>>
    %229 = vector.broadcast %228 : f32 to vector<16x128xf32>
    %230 = arith.mulf %19, %229 : vector<16x128xf32>
    %231 = arith.addf %227, %230 : vector<16x128xf32>
    %c45 = arith.constant 45 : index
    %232 = memref.load %arg1[%c45] : memref<128xf32, #tpu.memory_space<smem>>
    %233 = vector.broadcast %232 : f32 to vector<16x128xf32>
    %234 = arith.mulf %22, %233 : vector<16x128xf32>
    %235 = arith.addf %231, %234 : vector<16x128xf32>
    %c46 = arith.constant 46 : index
    %236 = memref.load %arg1[%c46] : memref<128xf32, #tpu.memory_space<smem>>
    %237 = vector.broadcast %236 : f32 to vector<16x128xf32>
    %238 = arith.mulf %25, %237 : vector<16x128xf32>
    %239 = arith.addf %235, %238 : vector<16x128xf32>
    %c47 = arith.constant 47 : index
    %240 = memref.load %arg1[%c47] : memref<128xf32, #tpu.memory_space<smem>>
    %241 = vector.broadcast %240 : f32 to vector<16x128xf32>
    %242 = arith.mulf %28, %241 : vector<16x128xf32>
    %243 = arith.addf %239, %242 : vector<16x128xf32>
    %c48 = arith.constant 48 : index
    %244 = memref.load %arg1[%c48] : memref<128xf32, #tpu.memory_space<smem>>
    %245 = vector.broadcast %244 : f32 to vector<16x128xf32>
    %246 = arith.mulf %31, %245 : vector<16x128xf32>
    %247 = arith.addf %243, %246 : vector<16x128xf32>
    %c49 = arith.constant 49 : index
    %248 = memref.load %arg1[%c49] : memref<128xf32, #tpu.memory_space<smem>>
    %249 = vector.broadcast %248 : f32 to vector<16x128xf32>
    %250 = arith.mulf %34, %249 : vector<16x128xf32>
    %251 = arith.addf %247, %250 : vector<16x128xf32>
    %c50 = arith.constant 50 : index
    %252 = memref.load %arg1[%c50] : memref<128xf32, #tpu.memory_space<smem>>
    %253 = vector.broadcast %252 : f32 to vector<16x128xf32>
    %254 = arith.mulf %37, %253 : vector<16x128xf32>
    %255 = arith.addf %251, %254 : vector<16x128xf32>
    %c51 = arith.constant 51 : index
    %256 = memref.load %arg1[%c51] : memref<128xf32, #tpu.memory_space<smem>>
    %257 = vector.broadcast %256 : f32 to vector<16x128xf32>
    %258 = arith.mulf %40, %257 : vector<16x128xf32>
    %259 = arith.addf %255, %258 : vector<16x128xf32>
    %c55 = arith.constant 55 : index
    %260 = memref.load %arg1[%c55] : memref<128xf32, #tpu.memory_space<smem>>
    %261 = vector.broadcast %260 : f32 to vector<16x128xf32>
    %262 = arith.addf %259, %261 : vector<16x128xf32>
    %cst_28 = arith.constant 0.000000e+00 : f32
    %263 = vector.broadcast %cst_28 : f32 to vector<16x128xf32>
    %264 = arith.maximumf %262, %263 : vector<16x128xf32>
    %c56 = arith.constant 56 : index
    %265 = memref.load %arg1[%c56] : memref<128xf32, #tpu.memory_space<smem>>
    %266 = vector.broadcast %265 : f32 to vector<16x128xf32>
    %267 = arith.mulf %96, %266 : vector<16x128xf32>
    %c57 = arith.constant 57 : index
    %268 = memref.load %arg1[%c57] : memref<128xf32, #tpu.memory_space<smem>>
    %269 = vector.broadcast %268 : f32 to vector<16x128xf32>
    %270 = arith.mulf %152, %269 : vector<16x128xf32>
    %271 = arith.addf %267, %270 : vector<16x128xf32>
    %c58 = arith.constant 58 : index
    %272 = memref.load %arg1[%c58] : memref<128xf32, #tpu.memory_space<smem>>
    %273 = vector.broadcast %272 : f32 to vector<16x128xf32>
    %274 = arith.mulf %208, %273 : vector<16x128xf32>
    %275 = arith.addf %271, %274 : vector<16x128xf32>
    %c59 = arith.constant 59 : index
    %276 = memref.load %arg1[%c59] : memref<128xf32, #tpu.memory_space<smem>>
    %277 = vector.broadcast %276 : f32 to vector<16x128xf32>
    %278 = arith.mulf %264, %277 : vector<16x128xf32>
    %279 = arith.addf %275, %278 : vector<16x128xf32>
    %c72 = arith.constant 72 : index
    %280 = memref.load %arg1[%c72] : memref<128xf32, #tpu.memory_space<smem>>
    %281 = vector.broadcast %280 : f32 to vector<16x128xf32>
    %282 = arith.addf %279, %281 : vector<16x128xf32>
    %cst_29 = arith.constant 0.000000e+00 : f32
    %283 = vector.broadcast %cst_29 : f32 to vector<16x128xf32>
    %284 = arith.maximumf %282, %283 : vector<16x128xf32>
    %c60 = arith.constant 60 : index
    %285 = memref.load %arg1[%c60] : memref<128xf32, #tpu.memory_space<smem>>
    %286 = vector.broadcast %285 : f32 to vector<16x128xf32>
    %287 = arith.mulf %96, %286 : vector<16x128xf32>
    %c61 = arith.constant 61 : index
    %288 = memref.load %arg1[%c61] : memref<128xf32, #tpu.memory_space<smem>>
    %289 = vector.broadcast %288 : f32 to vector<16x128xf32>
    %290 = arith.mulf %152, %289 : vector<16x128xf32>
    %291 = arith.addf %287, %290 : vector<16x128xf32>
    %c62 = arith.constant 62 : index
    %292 = memref.load %arg1[%c62] : memref<128xf32, #tpu.memory_space<smem>>
    %293 = vector.broadcast %292 : f32 to vector<16x128xf32>
    %294 = arith.mulf %208, %293 : vector<16x128xf32>
    %295 = arith.addf %291, %294 : vector<16x128xf32>
    %c63 = arith.constant 63 : index
    %296 = memref.load %arg1[%c63] : memref<128xf32, #tpu.memory_space<smem>>
    %297 = vector.broadcast %296 : f32 to vector<16x128xf32>
    %298 = arith.mulf %264, %297 : vector<16x128xf32>
    %299 = arith.addf %295, %298 : vector<16x128xf32>
    %c73 = arith.constant 73 : index
    %300 = memref.load %arg1[%c73] : memref<128xf32, #tpu.memory_space<smem>>
    %301 = vector.broadcast %300 : f32 to vector<16x128xf32>
    %302 = arith.addf %299, %301 : vector<16x128xf32>
    %cst_30 = arith.constant 0.000000e+00 : f32
    %303 = vector.broadcast %cst_30 : f32 to vector<16x128xf32>
    %304 = arith.maximumf %302, %303 : vector<16x128xf32>
    %c64 = arith.constant 64 : index
    %305 = memref.load %arg1[%c64] : memref<128xf32, #tpu.memory_space<smem>>
    %306 = vector.broadcast %305 : f32 to vector<16x128xf32>
    %307 = arith.mulf %96, %306 : vector<16x128xf32>
    %c65 = arith.constant 65 : index
    %308 = memref.load %arg1[%c65] : memref<128xf32, #tpu.memory_space<smem>>
    %309 = vector.broadcast %308 : f32 to vector<16x128xf32>
    %310 = arith.mulf %152, %309 : vector<16x128xf32>
    %311 = arith.addf %307, %310 : vector<16x128xf32>
    %c66 = arith.constant 66 : index
    %312 = memref.load %arg1[%c66] : memref<128xf32, #tpu.memory_space<smem>>
    %313 = vector.broadcast %312 : f32 to vector<16x128xf32>
    %314 = arith.mulf %208, %313 : vector<16x128xf32>
    %315 = arith.addf %311, %314 : vector<16x128xf32>
    %c67 = arith.constant 67 : index
    %316 = memref.load %arg1[%c67] : memref<128xf32, #tpu.memory_space<smem>>
    %317 = vector.broadcast %316 : f32 to vector<16x128xf32>
    %318 = arith.mulf %264, %317 : vector<16x128xf32>
    %319 = arith.addf %315, %318 : vector<16x128xf32>
    %c74 = arith.constant 74 : index
    %320 = memref.load %arg1[%c74] : memref<128xf32, #tpu.memory_space<smem>>
    %321 = vector.broadcast %320 : f32 to vector<16x128xf32>
    %322 = arith.addf %319, %321 : vector<16x128xf32>
    %cst_31 = arith.constant 0.000000e+00 : f32
    %323 = vector.broadcast %cst_31 : f32 to vector<16x128xf32>
    %324 = arith.maximumf %322, %323 : vector<16x128xf32>
    %c68 = arith.constant 68 : index
    %325 = memref.load %arg1[%c68] : memref<128xf32, #tpu.memory_space<smem>>
    %326 = vector.broadcast %325 : f32 to vector<16x128xf32>
    %327 = arith.mulf %96, %326 : vector<16x128xf32>
    %c69 = arith.constant 69 : index
    %328 = memref.load %arg1[%c69] : memref<128xf32, #tpu.memory_space<smem>>
    %329 = vector.broadcast %328 : f32 to vector<16x128xf32>
    %330 = arith.mulf %152, %329 : vector<16x128xf32>
    %331 = arith.addf %327, %330 : vector<16x128xf32>
    %c70 = arith.constant 70 : index
    %332 = memref.load %arg1[%c70] : memref<128xf32, #tpu.memory_space<smem>>
    %333 = vector.broadcast %332 : f32 to vector<16x128xf32>
    %334 = arith.mulf %208, %333 : vector<16x128xf32>
    %335 = arith.addf %331, %334 : vector<16x128xf32>
    %c71 = arith.constant 71 : index
    %336 = memref.load %arg1[%c71] : memref<128xf32, #tpu.memory_space<smem>>
    %337 = vector.broadcast %336 : f32 to vector<16x128xf32>
    %338 = arith.mulf %264, %337 : vector<16x128xf32>
    %339 = arith.addf %335, %338 : vector<16x128xf32>
    %c75 = arith.constant 75 : index
    %340 = memref.load %arg1[%c75] : memref<128xf32, #tpu.memory_space<smem>>
    %341 = vector.broadcast %340 : f32 to vector<16x128xf32>
    %342 = arith.addf %339, %341 : vector<16x128xf32>
    %cst_32 = arith.constant 0.000000e+00 : f32
    %343 = vector.broadcast %cst_32 : f32 to vector<16x128xf32>
    %344 = arith.maximumf %342, %343 : vector<16x128xf32>
    %c76 = arith.constant 76 : index
    %345 = memref.load %arg1[%c76] : memref<128xf32, #tpu.memory_space<smem>>
    %346 = vector.broadcast %345 : f32 to vector<16x128xf32>
    %347 = arith.mulf %284, %346 : vector<16x128xf32>
    %c77 = arith.constant 77 : index
    %348 = memref.load %arg1[%c77] : memref<128xf32, #tpu.memory_space<smem>>
    %349 = vector.broadcast %348 : f32 to vector<16x128xf32>
    %350 = arith.mulf %304, %349 : vector<16x128xf32>
    %351 = arith.addf %347, %350 : vector<16x128xf32>
    %c78 = arith.constant 78 : index
    %352 = memref.load %arg1[%c78] : memref<128xf32, #tpu.memory_space<smem>>
    %353 = vector.broadcast %352 : f32 to vector<16x128xf32>
    %354 = arith.mulf %324, %353 : vector<16x128xf32>
    %355 = arith.addf %351, %354 : vector<16x128xf32>
    %c79 = arith.constant 79 : index
    %356 = memref.load %arg1[%c79] : memref<128xf32, #tpu.memory_space<smem>>
    %357 = vector.broadcast %356 : f32 to vector<16x128xf32>
    %358 = arith.mulf %344, %357 : vector<16x128xf32>
    %359 = arith.addf %355, %358 : vector<16x128xf32>
    %c80 = arith.constant 80 : index
    %360 = memref.load %arg1[%c80] : memref<128xf32, #tpu.memory_space<smem>>
    %361 = vector.broadcast %360 : f32 to vector<16x128xf32>
    %362 = arith.addf %359, %361 : vector<16x128xf32>
    %cst_33 = arith.constant 8.000000e+01 : f32
    %363 = vector.broadcast %cst_33 : f32 to vector<16x128xf32>
    %364 = arith.minimumf %362, %363 : vector<16x128xf32>
    %365 = math.exp %364 : vector<16x128xf32>
    %cst_34 = arith.constant 1.000000e+00 : f32
    %366 = vector.broadcast %cst_34 : f32 to vector<16x128xf32>
    %367 = arith.addf %366, %365 : vector<16x128xf32>
    %368 = tpu.reciprocal %367 {approx = true} : vector<16x128xf32> -> vector<16x128xf32>
    %369 = arith.index_cast %1 : i32 to index
    %c0_35 = arith.constant 0 : index
    %370 = vector.load %arg3[%369, %c0_35] : memref<16x128xf32, #tpu.memory_space<vmem>>, vector<16x128xf32>
    tpu.vector_store %arg3[%369, %c0_35], %368 {strides = array<i32>} : memref<16x128xf32, #tpu.memory_space<vmem>>, vector<16x128xf32>,
    %c1_i32 = arith.constant 1 : i32
    return
  }
  func.func @transform_0(%arg0: i32) -> i32 {
    %c0_i32 = arith.constant 0 : i32
    %c0_i32_0 = arith.constant 0 : i32
    return %c0_i32 : i32
  }
  func.func @transform_1(%arg0: i32) -> (i32, i32, i32) {
    %c0_i32 = arith.constant 0 : i32
    %c0_i32_0 = arith.constant 0 : i32
    %c0_i32_1 = arith.constant 0 : i32
    return %c0_i32, %arg0, %c0_i32_0 : i32, i32, i32
  }
  func.func @transform_2(%arg0: i32) -> (i32, i32) {
    %c0_i32 = arith.constant 0 : i32
    %c0_i32_0 = arith.constant 0 : i32
    return %arg0, %c0_i32 : i32, i32
  }
}

</mosaic_0001>

<llo_original>
// kernel: net_forward.1
$region0: #{net_forward.1}
  #allocation0 [shape = 'u32[]', space=smem, size = 0x4, offset = 0x4, fixed_abs, tag = 'smem constant byte address 0x4 - core index']
  #allocation1 [shape = 'u32[144,128]{1,0:T(1,128)}', space=vmem, size = 0x12000, scoped, tag = 'internal scratch']
  %s0 = inlined_call_operand.vmem [shape: f32[128], index: 0, kind: input, shape index: {}]
  %s1 = inlined_call_operand.vmem [shape: f32[13,16,128], index: 1, kind: input, shape index: {}]
  %s2 = inlined_call_operand.vmem [shape: f32[16,128], index: 2, kind: output, shape index: {}]
  %s3 = sld [smem:[#allocation0]]
  $region22: #{net_forward.1} parent=0
    _
  %s5 = ssub.s32 1, %s3
  %s6 = scalar_select 0, %s5, %s3
  $region1: #{net_forward.1} parent=0
    #allocation2 [shape = 'u8[512]{0}', space=smem, size = 0x200, scoped, tag = 'input window, operand 0, single buffered']
    #allocation3 [shape = 's32[1]{0}', space=sflag, size = 0x4, scoped, tag = 'scoped memory for net_forward.1']
    %7 = vsyncpa [#allocation3], 0
    // Predicated region
    $region2: #{net_forward.1} parent=1 // pred_check
      _
    $region3: #{net_forward.1} parent=1 // pred_check_branch
      %9 = sbr.rel (0) target = $region5
    $region4: #{net_forward.1} parent=1 // pred_region
      %s11 = ssub.s32 16, 16
      %12 = vsyncadd [#allocation3], %s11
      %s14 = sshll.u32 %s0, 4
      %s15 = int_to_ptr.vmem [resolvable:$true] %s14
      %17 = dma.vmem_to_smem %s15, 16, [#allocation2], [#allocation3]
    $region5: #{net_forward.1} parent=1 // pred_fallthru
      _
    // Predicated region
    $region6: #{net_forward.1} parent=1 // pred_check
      _
    $region7: #{net_forward.1} parent=1 // pred_check_branch
      %19 = sbr.rel (0) target = $region9
    $region8: #{net_forward.1} parent=1 // pred_region
      _
    $region9: #{net_forward.1} parent=1 // pred_fallthru
      _
    // Predicated region
    $region10: #{net_forward.1} parent=1 // pred_check
      _
    $region11: #{net_forward.1} parent=1 // pred_check_branch
      %21 = sbr.rel (0) target = $region13
    $region12: #{net_forward.1} parent=1 // pred_region
      %22 = dma.done [#allocation3], 16
    $region13: #{net_forward.1} parent=1 // pred_fallthru
      _
    %23 = sfence
    %v24 = vld [vmem:[%s1] sm:$0xff]
    %v25 = vld [vmem:[%s1 + $0x8] sm:$0xff]
    %s26 = sadd.s32 0, 16
    %s27 = scalar_lea.vmem %s1, %s26
    %v28 = vld [vmem:[%s27] sm:$0xff]
    %v29 = vld [vmem:[%s27 + $0x8] sm:$0xff]
    %s30 = sadd.s32 0, 32
    %s31 = scalar_lea.vmem %s1, %s30
    %v32 = vld [vmem:[%s31] sm:$0xff]
    %v33 = vld [vmem:[%s31 + $0x8] sm:$0xff]
    %s34 = sadd.s32 0, 48
    %s35 = scalar_lea.vmem %s1, %s34
    %v36 = vld [vmem:[%s35] sm:$0xff]
    %v37 = vld [vmem:[%s35 + $0x8] sm:$0xff]
    %s38 = sadd.s32 0, 64
    %s39 = scalar_lea.vmem %s1, %s38
    %v40 = vld [vmem:[%s39] sm:$0xff]
    %v41 = vld [vmem:[%s39 + $0x8] sm:$0xff]
    %s42 = sadd.s32 0, 80
    %s43 = scalar_lea.vmem %s1, %s42
    %v44 = vld [vmem:[%s43] sm:$0xff]
    %v45 = vld [vmem:[%s43 + $0x8] sm:$0xff]
    %s46 = sadd.s32 0, 96
    %s47 = scalar_lea.vmem %s1, %s46
    %v48 = vld [vmem:[%s47] sm:$0xff]
    %v49 = vld [vmem:[%s47 + $0x8] sm:$0xff]
    %s50 = sadd.s32 0, 112
    %s51 = scalar_lea.vmem %s1, %s50
    %v52 = vld [vmem:[%s51] sm:$0xff]
    %v53 = vld [vmem:[%s51 + $0x8] sm:$0xff]
    %s54 = sadd.s32 0, 128
    %s55 = scalar_lea.vmem %s1, %s54
    %v56 = vld [vmem:[%s55] sm:$0xff]
    %v57 = vld [vmem:[%s55 + $0x8] sm:$0xff]
    %s58 = sadd.s32 0, 144
    %s59 = scalar_lea.vmem %s1, %s58
    %v60 = vld [vmem:[%s59] sm:$0xff]
    %v61 = vld [vmem:[%s59 + $0x8] sm:$0xff]
    %s62 = sadd.s32 0, 160
    %s63 = scalar_lea.vmem %s1, %s62
    %v64 = vld [vmem:[%s63] sm:$0xff]
    %v65 = vld [vmem:[%s63 + $0x8] sm:$0xff]
    %s66 = sadd.s32 0, 176
    %s67 = scalar_lea.vmem %s1, %s66
    %v68 = vld [vmem:[%s67] sm:$0xff]
    %v69 = vld [vmem:[%s67 + $0x8] sm:$0xff]
    %s70 = sadd.s32 0, 192
    %s71 = scalar_lea.vmem %s1, %s70
    %v72 = vld [vmem:[%s71] sm:$0xff]
    %v73 = vld [vmem:[%s71 + $0x8] sm:$0xff]
    %s74 = sld [smem:[#allocation2]]
    %v75 = vstv %s74
    %v76 = vmul.f32 %v24, %v75
    %v77 = vmul.f32 %v25, %v75
    %s78 = sld [smem:[#allocation2 + $0x1]]
    %v79 = vstv %s78
    %v80 = vmul.f32 %v28, %v79
    %v81 = vmul.f32 %v29, %v79
    %v82 = vadd.f32 %v76, %v80
    %v83 = vadd.f32 %v77, %v81
    %s84 = sld [smem:[#allocation2 + $0x2]]
    %v85 = vstv %s84
    %v86 = vmul.f32 %v32, %v85
    %v87 = vmul.f32 %v33, %v85
    %v88 = vadd.f32 %v82, %v86
    %v89 = vadd.f32 %v83, %v87
    %s90 = sld [smem:[#allocation2 + $0x3]]
    %v91 = vstv %s90
    %v92 = vmul.f32 %v36, %v91
    %v93 = vmul.f32 %v37, %v91
    %v94 = vadd.f32 %v88, %v92
    %v95 = vadd.f32 %v89, %v93
    %s96 = sld [smem:[#allocation2 + $0x4]]
    %v97 = vstv %s96
    %v98 = vmul.f32 %v40, %v97
    %v99 = vmul.f32 %v41, %v97
    %v100 = vadd.f32 %v94, %v98
    %v101 = vadd.f32 %v95, %v99
    %s102 = sld [smem:[#allocation2 + $0x5]]
    %v103 = vstv %s102
    %v104 = vmul.f32 %v44, %v103
    %v105 = vmul.f32 %v45, %v103
    %v106 = vadd.f32 %v100, %v104
    %v107 = vadd.f32 %v101, %v105
    %s108 = sld [smem:[#allocation2 + $0x6]]
    %v109 = vstv %s108
    %v110 = vmul.f32 %v48, %v109
    %v111 = vmul.f32 %v49, %v109
    %v112 = vadd.f32 %v106, %v110
    %v113 = vadd.f32 %v107, %v111
    %s114 = sld [smem:[#allocation2 + $0x7]]
    %v115 = vstv %s114
    %v116 = vmul.f32 %v52, %v115
    %v117 = vmul.f32 %v53, %v115
    %v118 = vadd.f32 %v112, %v116
    %v119 = vadd.f32 %v113, %v117
    %s120 = sld [smem:[#allocation2 + $0x8]]
    %v121 = vstv %s120
    %v122 = vmul.f32 %v56, %v121
    %v123 = vmul.f32 %v57, %v121
    %v124 = vadd.f32 %v118, %v122
    %v125 = vadd.f32 %v119, %v123
    %s126 = sld [smem:[#allocation2 + $0x9]]
    %v127 = vstv %s126
    %v128 = vmul.f32 %v60, %v127
    %v129 = vmul.f32 %v61, %v127
    %v130 = vadd.f32 %v124, %v128
    %v131 = vadd.f32 %v125, %v129
    %s132 = sld [smem:[#allocation2 + $0xa]]
    %v133 = vstv %s132
    %v134 = vmul.f32 %v64, %v133
    %v135 = vmul.f32 %v65, %v133
    %v136 = vadd.f32 %v130, %v134
    %v137 = vadd.f32 %v131, %v135
    %s138 = sld [smem:[#allocation2 + $0xb]]
    %v139 = vstv %s138
    %v140 = vmul.f32 %v68, %v139
    %v141 = vmul.f32 %v69, %v139
    %v142 = vadd.f32 %v136, %v140
    %v143 = vadd.f32 %v137, %v141
    %s144 = sld [smem:[#allocation2 + $0xc]]
    %v145 = vstv %s144
    %v146 = vmul.f32 %v72, %v145
    %v147 = vmul.f32 %v73, %v145
    %v148 = vadd.f32 %v142, %v146
    %v149 = vadd.f32 %v143, %v147
    %s150 = sld [smem:[#allocation2 + $0x34]]
    %v151 = vstv %s150
    %v152 = vadd.f32 %v148, %v151
    %v153 = vadd.f32 %v149, %v151
    %v154 = vmax.f32 %v152, 0.0
    %v155 = vmax.f32 %v153, 0.0
    %s156 = sld [smem:[#allocation2 + $0xd]]
    %v157 = vstv %s156
    %v158 = vmul.f32 %v24, %v157
    %v159 = vmul.f32 %v25, %v157
    %s160 = sld [smem:[#allocation2 + $0xe]]
    %v161 = vstv %s160
    %v162 = vmul.f32 %v28, %v161
    %v163 = vmul.f32 %v29, %v161
    %v164 = vadd.f32 %v158, %v162
    %v165 = vadd.f32 %v159, %v163
    %s166 = sld [smem:[#allocation2 + $0xf]]
    %v167 = vstv %s166
    %v168 = vmul.f32 %v32, %v167
    %v169 = vmul.f32 %v33, %v167
    %v170 = vadd.f32 %v164, %v168
    %v171 = vadd.f32 %v165, %v169
    %s172 = sld [smem:[#allocation2 + $0x10]]
    %v173 = vstv %s172
    %v174 = vmul.f32 %v36, %v173
    %v175 = vmul.f32 %v37, %v173
    %v176 = vadd.f32 %v170, %v174
    %v177 = vadd.f32 %v171, %v175
    %s178 = sld [smem:[#allocation2 + $0x11]]
    %v179 = vstv %s178
    %v180 = vmul.f32 %v40, %v179
    %v181 = vmul.f32 %v41, %v179
    %v182 = vadd.f32 %v176, %v180
    %v183 = vadd.f32 %v177, %v181
    %s184 = sld [smem:[#allocation2 + $0x12]]
    %v185 = vstv %s184
    %v186 = vmul.f32 %v44, %v185
    %v187 = vmul.f32 %v45, %v185
    %v188 = vadd.f32 %v182, %v186
    %v189 = vadd.f32 %v183, %v187
    %s190 = sld [smem:[#allocation2 + $0x13]]
    %v191 = vstv %s190
    %v192 = vmul.f32 %v48, %v191
    %v193 = vmul.f32 %v49, %v191
    %v194 = vadd.f32 %v188, %v192
    %v195 = vadd.f32 %v189, %v193
    %s196 = sld [smem:[#allocation2 + $0x14]]
    %v197 = vstv %s196
    %v198 = vmul.f32 %v52, %v197
    %v199 = vmul.f32 %v53, %v197
    %v200 = vadd.f32 %v194, %v198
    %v201 = vadd.f32 %v195, %v199
    %s202 = sld [smem:[#allocation2 + $0x15]]
    %v203 = vstv %s202
    %v204 = vmul.f32 %v56, %v203
    %v205 = vmul.f32 %v57, %v203
    %v206 = vadd.f32 %v200, %v204
    %v207 = vadd.f32 %v201, %v205
    %s208 = sld [smem:[#allocation2 + $0x16]]
    %v209 = vstv %s208
    %v210 = vmul.f32 %v60, %v209
    %v211 = vmul.f32 %v61, %v209
    %v212 = vadd.f32 %v206, %v210
    %v213 = vadd.f32 %v207, %v211
    %s214 = sld [smem:[#allocation2 + $0x17]]
    %v215 = vstv %s214
    %v216 = vmul.f32 %v64, %v215
    %v217 = vmul.f32 %v65, %v215
    %v218 = vadd.f32 %v212, %v216
    %v219 = vadd.f32 %v213, %v217
    %s220 = sld [smem:[#allocation2 + $0x18]]
    %v221 = vstv %s220
    %v222 = vmul.f32 %v68, %v221
    %v223 = vmul.f32 %v69, %v221
    %v224 = vadd.f32 %v218, %v222
    %v225 = vadd.f32 %v219, %v223
    %s226 = sld [smem:[#allocation2 + $0x19]]
    %v227 = vstv %s226
    %v228 = vmul.f32 %v72, %v227
    %v229 = vmul.f32 %v73, %v227
    %v230 = vadd.f32 %v224, %v228
    %v231 = vadd.f32 %v225, %v229
    %s232 = sld [smem:[#allocation2 + $0x35]]
    %v233 = vstv %s232
    %v234 = vadd.f32 %v230, %v233
    %v235 = vadd.f32 %v231, %v233
    %v236 = vmax.f32 %v234, 0.0
    %v237 = vmax.f32 %v235, 0.0
    %s238 = sld [smem:[#allocation2 + $0x1a]]
    %v239 = vstv %s238
    %v240 = vmul.f32 %v24, %v239
    %v241 = vmul.f32 %v25, %v239
    %s242 = sld [smem:[#allocation2 + $0x1b]]
    %v243 = vstv %s242
    %v244 = vmul.f32 %v28, %v243
    %v245 = vmul.f32 %v29, %v243
    %v246 = vadd.f32 %v240, %v244
    %v247 = vadd.f32 %v241, %v245
    %s248 = sld [smem:[#allocation2 + $0x1c]]
    %v249 = vstv %s248
    %v250 = vmul.f32 %v32, %v249
    %v251 = vmul.f32 %v33, %v249
    %v252 = vadd.f32 %v246, %v250
    %v253 = vadd.f32 %v247, %v251
    %s254 = sld [smem:[#allocation2 + $0x1d]]
    %v255 = vstv %s254
    %v256 = vmul.f32 %v36, %v255
    %v257 = vmul.f32 %v37, %v255
    %v258 = vadd.f32 %v252, %v256
    %v259 = vadd.f32 %v253, %v257
    %s260 = sld [smem:[#allocation2 + $0x1e]]
    %v261 = vstv %s260
    %v262 = vmul.f32 %v40, %v261
    %v263 = vmul.f32 %v41, %v261
    %v264 = vadd.f32 %v258, %v262
    %v265 = vadd.f32 %v259, %v263
    %s266 = sld [smem:[#allocation2 + $0x1f]]
    %v267 = vstv %s266
    %v268 = vmul.f32 %v44, %v267
    %v269 = vmul.f32 %v45, %v267
    %v270 = vadd.f32 %v264, %v268
    %v271 = vadd.f32 %v265, %v269
    %s272 = sld [smem:[#allocation2 + $0x20]]
    %v273 = vstv %s272
    %v274 = vmul.f32 %v48, %v273
    %v275 = vmul.f32 %v49, %v273
    %v276 = vadd.f32 %v270, %v274
    %v277 = vadd.f32 %v271, %v275
    %s278 = sld [smem:[#allocation2 + $0x21]]
    %v279 = vstv %s278
    %v280 = vmul.f32 %v52, %v279
    %v281 = vmul.f32 %v53, %v279
    %v282 = vadd.f32 %v276, %v280
    %v283 = vadd.f32 %v277, %v281
    %s284 = sld [smem:[#allocation2 + $0x22]]
    %v285 = vstv %s284
    %v286 = vmul.f32 %v56, %v285
    %v287 = vmul.f32 %v57, %v285
    %v288 = vadd.f32 %v282, %v286
    %v289 = vadd.f32 %v283, %v287
    %s290 = sld [smem:[#allocation2 + $0x23]]
    %v291 = vstv %s290
    %v292 = vmul.f32 %v60, %v291
    %v293 = vmul.f32 %v61, %v291
    %v294 = vadd.f32 %v288, %v292
    %v295 = vadd.f32 %v289, %v293
    %s296 = sld [smem:[#allocation2 + $0x24]]
    %v297 = vstv %s296
    %v298 = vmul.f32 %v64, %v297
    %v299 = vmul.f32 %v65, %v297
    %v300 = vadd.f32 %v294, %v298
    %v301 = vadd.f32 %v295, %v299
    %s302 = sld [smem:[#allocation2 + $0x25]]
    %v303 = vstv %s302
    %v304 = vmul.f32 %v68, %v303
    %v305 = vmul.f32 %v69, %v303
    %v306 = vadd.f32 %v300, %v304
    %v307 = vadd.f32 %v301, %v305
    %s308 = sld [smem:[#allocation2 + $0x26]]
    %v309 = vstv %s308
    %v310 = vmul.f32 %v72, %v309
    %v311 = vmul.f32 %v73, %v309
    %v312 = vadd.f32 %v306, %v310
    %v313 = vadd.f32 %v307, %v311
    %s314 = sld [smem:[#allocation2 + $0x36]]
    %v315 = vstv %s314
    %v316 = vadd.f32 %v312, %v315
    %v317 = vadd.f32 %v313, %v315
    %v318 = vmax.f32 %v316, 0.0
    %v319 = vmax.f32 %v317, 0.0
    %s320 = sld [smem:[#allocation2 + $0x27]]
    %v321 = vstv %s320
    %v322 = vmul.f32 %v24, %v321
    %v323 = vmul.f32 %v25, %v321
    %s324 = sld [smem:[#allocation2 + $0x28]]
    %v325 = vstv %s324
    %v326 = vmul.f32 %v28, %v325
    %v327 = vmul.f32 %v29, %v325
    %v328 = vadd.f32 %v322, %v326
    %v329 = vadd.f32 %v323, %v327
    %s330 = sld [smem:[#allocation2 + $0x29]]
    %v331 = vstv %s330
    %v332 = vmul.f32 %v32, %v331
    %v333 = vmul.f32 %v33, %v331
    %v334 = vadd.f32 %v328, %v332
    %v335 = vadd.f32 %v329, %v333
    %s336 = sld [smem:[#allocation2 + $0x2a]]
    %v337 = vstv %s336
    %v338 = vmul.f32 %v36, %v337
    %v339 = vmul.f32 %v37, %v337
    %v340 = vadd.f32 %v334, %v338
    %v341 = vadd.f32 %v335, %v339
    %s342 = sld [smem:[#allocation2 + $0x2b]]
    %v343 = vstv %s342
    %v344 = vmul.f32 %v40, %v343
    %v345 = vmul.f32 %v41, %v343
    %v346 = vadd.f32 %v340, %v344
    %v347 = vadd.f32 %v341, %v345
    %s348 = sld [smem:[#allocation2 + $0x2c]]
    %v349 = vstv %s348
    %v350 = vmul.f32 %v44, %v349
    %v351 = vmul.f32 %v45, %v349
    %v352 = vadd.f32 %v346, %v350
    %v353 = vadd.f32 %v347, %v351
    %s354 = sld [smem:[#allocation2 + $0x2d]]
    %v355 = vstv %s354
    %v356 = vmul.f32 %v48, %v355
    %v357 = vmul.f32 %v49, %v355
    %v358 = vadd.f32 %v352, %v356
    %v359 = vadd.f32 %v353, %v357
    %s360 = sld [smem:[#allocation2 + $0x2e]]
    %v361 = vstv %s360
    %v362 = vmul.f32 %v52, %v361
    %v363 = vmul.f32 %v53, %v361
    %v364 = vadd.f32 %v358, %v362
    %v365 = vadd.f32 %v359, %v363
    %s366 = sld [smem:[#allocation2 + $0x2f]]
    %v367 = vstv %s366
    %v368 = vmul.f32 %v56, %v367
    %v369 = vmul.f32 %v57, %v367
    %v370 = vadd.f32 %v364, %v368
    %v371 = vadd.f32 %v365, %v369
    %s372 = sld [smem:[#allocation2 + $0x30]]
    %v373 = vstv %s372
    %v374 = vmul.f32 %v60, %v373
    %v375 = vmul.f32 %v61, %v373
    %v376 = vadd.f32 %v370, %v374
    %v377 = vadd.f32 %v371, %v375
    %s378 = sld [smem:[#allocation2 + $0x31]]
    %v379 = vstv %s378
    %v380 = vmul.f32 %v64, %v379
    %v381 = vmul.f32 %v65, %v379
    %v382 = vadd.f32 %v376, %v380
    %v383 = vadd.f32 %v377, %v381
    %s384 = sld [smem:[#allocation2 + $0x32]]
    %v385 = vstv %s384
    %v386 = vmul.f32 %v68, %v385
    %v387 = vmul.f32 %v69, %v385
    %v388 = vadd.f32 %v382, %v386
    %v389 = vadd.f32 %v383, %v387
    %s390 = sld [smem:[#allocation2 + $0x33]]
    %v391 = vstv %s390
    %v392 = vmul.f32 %v72, %v391
    %v393 = vmul.f32 %v73, %v391
    %v394 = vadd.f32 %v388, %v392
    %v395 = vadd.f32 %v389, %v393
    %s396 = sld [smem:[#allocation2 + $0x37]]
    %v397 = vstv %s396
    %v398 = vadd.f32 %v394, %v397
    %v399 = vadd.f32 %v395, %v397
    %v400 = vmax.f32 %v398, 0.0
    %v401 = vmax.f32 %v399, 0.0
    %s402 = sld [smem:[#allocation2 + $0x38]]
    %v403 = vstv %s402
    %v404 = vmul.f32 %v154, %v403
    %v405 = vmul.f32 %v155, %v403
    %s406 = sld [smem:[#allocation2 + $0x39]]
    %v407 = vstv %s406
    %v408 = vmul.f32 %v236, %v407
    %v409 = vmul.f32 %v237, %v407
    %v410 = vadd.f32 %v404, %v408
    %v411 = vadd.f32 %v405, %v409
    %s412 = sld [smem:[#allocation2 + $0x3a]]
    %v413 = vstv %s412
    %v414 = vmul.f32 %v318, %v413
    %v415 = vmul.f32 %v319, %v413
    %v416 = vadd.f32 %v410, %v414
    %v417 = vadd.f32 %v411, %v415
    %s418 = sld [smem:[#allocation2 + $0x3b]]
    %v419 = vstv %s418
    %v420 = vmul.f32 %v400, %v419
    %v421 = vmul.f32 %v401, %v419
    %v422 = vadd.f32 %v416, %v420
    %v423 = vadd.f32 %v417, %v421
    %s424 = sld [smem:[#allocation2 + $0x48]]
    %v425 = vstv %s424
    %v426 = vadd.f32 %v422, %v425
    %v427 = vadd.f32 %v423, %v425
    %v428 = vmax.f32 %v426, 0.0
    %v429 = vmax.f32 %v427, 0.0
    %s430 = sld [smem:[#allocation2 + $0x3c]]
    %v431 = vstv %s430
    %v432 = vmul.f32 %v154, %v431
    %v433 = vmul.f32 %v155, %v431
    %s434 = sld [smem:[#allocation2 + $0x3d]]
    %v435 = vstv %s434
    %v436 = vmul.f32 %v236, %v435
    %v437 = vmul.f32 %v237, %v435
    %v438 = vadd.f32 %v432, %v436
    %v439 = vadd.f32 %v433, %v437
    %s440 = sld [smem:[#allocation2 + $0x3e]]
    %v441 = vstv %s440
    %v442 = vmul.f32 %v318, %v441
    %v443 = vmul.f32 %v319, %v441
    %v444 = vadd.f32 %v438, %v442
    %v445 = vadd.f32 %v439, %v443
    %s446 = sld [smem:[#allocation2 + $0x3f]]
    %v447 = vstv %s446
    %v448 = vmul.f32 %v400, %v447
    %v449 = vmul.f32 %v401, %v447
    %v450 = vadd.f32 %v444, %v448
    %v451 = vadd.f32 %v445, %v449
    %s452 = sld [smem:[#allocation2 + $0x49]]
    %v453 = vstv %s452
    %v454 = vadd.f32 %v450, %v453
    %v455 = vadd.f32 %v451, %v453
    %v456 = vmax.f32 %v454, 0.0
    %v457 = vmax.f32 %v455, 0.0
    %s458 = sld [smem:[#allocation2 + $0x40]]
    %v459 = vstv %s458
    %v460 = vmul.f32 %v154, %v459
    %v461 = vmul.f32 %v155, %v459
    %s462 = sld [smem:[#allocation2 + $0x41]]
    %v463 = vstv %s462
    %v464 = vmul.f32 %v236, %v463
    %v465 = vmul.f32 %v237, %v463
    %v466 = vadd.f32 %v460, %v464
    %v467 = vadd.f32 %v461, %v465
    %s468 = sld [smem:[#allocation2 + $0x42]]
    %v469 = vstv %s468
    %v470 = vmul.f32 %v318, %v469
    %v471 = vmul.f32 %v319, %v469
    %v472 = vadd.f32 %v466, %v470
    %v473 = vadd.f32 %v467, %v471
    %s474 = sld [smem:[#allocation2 + $0x43]]
    %v475 = vstv %s474
    %v476 = vmul.f32 %v400, %v475
    %v477 = vmul.f32 %v401, %v475
    %v478 = vadd.f32 %v472, %v476
    %v479 = vadd.f32 %v473, %v477
    %s480 = sld [smem:[#allocation2 + $0x4a]]
    %v481 = vstv %s480
    %v482 = vadd.f32 %v478, %v481
    %v483 = vadd.f32 %v479, %v481
    %v484 = vmax.f32 %v482, 0.0
    %v485 = vmax.f32 %v483, 0.0
    %s486 = sld [smem:[#allocation2 + $0x44]]
    %v487 = vstv %s486
    %v488 = vmul.f32 %v154, %v487
    %v489 = vmul.f32 %v155, %v487
    %s490 = sld [smem:[#allocation2 + $0x45]]
    %v491 = vstv %s490
    %v492 = vmul.f32 %v236, %v491
    %v493 = vmul.f32 %v237, %v491
    %v494 = vadd.f32 %v488, %v492
    %v495 = vadd.f32 %v489, %v493
    %s496 = sld [smem:[#allocation2 + $0x46]]
    %v497 = vstv %s496
    %v498 = vmul.f32 %v318, %v497
    %v499 = vmul.f32 %v319, %v497
    %v500 = vadd.f32 %v494, %v498
    %v501 = vadd.f32 %v495, %v499
    %s502 = sld [smem:[#allocation2 + $0x47]]
    %v503 = vstv %s502
    %v504 = vmul.f32 %v400, %v503
    %v505 = vmul.f32 %v401, %v503
    %v506 = vadd.f32 %v500, %v504
    %v507 = vadd.f32 %v501, %v505
    %s508 = sld [smem:[#allocation2 + $0x4b]]
    %v509 = vstv %s508
    %v510 = vadd.f32 %v506, %v509
    %v511 = vadd.f32 %v507, %v509
    %v512 = vmax.f32 %v510, 0.0
    %v513 = vmax.f32 %v511, 0.0
    %s514 = sld [smem:[#allocation2 + $0x4c]]
    %v515 = vstv %s514
    %v516 = vmul.f32 %v428, %v515
    %v517 = vmul.f32 %v429, %v515
    %s518 = sld [smem:[#allocation2 + $0x4d]]
    %v519 = vstv %s518
    %v520 = vmul.f32 %v456, %v519
    %v521 = vmul.f32 %v457, %v519
    %v522 = vadd.f32 %v516, %v520
    %v523 = vadd.f32 %v517, %v521
    %s524 = sld [smem:[#allocation2 + $0x4e]]
    %v525 = vstv %s524
    %v526 = vmul.f32 %v484, %v525
    %v527 = vmul.f32 %v485, %v525
    %v528 = vadd.f32 %v522, %v526
    %v529 = vadd.f32 %v523, %v527
    %s530 = sld [smem:[#allocation2 + $0x4f]]
    %v531 = vstv %s530
    %v532 = vmul.f32 %v512, %v531
    %v533 = vmul.f32 %v513, %v531
    %v534 = vadd.f32 %v528, %v532
    %v535 = vadd.f32 %v529, %v533
    %s536 = sld [smem:[#allocation2 + $0x50]]
    %v537 = vstv %s536
    %v538 = vadd.f32 %v534, %v537
    %v539 = vadd.f32 %v535, %v537
    %v540 = vmin.f32 %v538, 80.0
    %v541 = vmin.f32 %v539, 80.0
    %v542 = vmul.f32 %v540, 1.442695
    %v543 = vpow.pop %v542
    %v544 = vmul.f32 %v541, 1.442695
    %v545 = vpow.pop %v544
    %v546 = vadd.f32 %v543, 1.0
    %v547 = vadd.f32 %v545, 1.0
    %v548 = vrcp.pop %v546
    %v549 = vrcp.pop %v547
    %550 = vst [vmem:[%s2] sm:$0xff] %v548
    %551 = vst [vmem:[%s2 + $0x8] sm:$0xff] %v549
    // Predicated region
    $region14: #{net_forward.1} parent=1 // pred_check
      _
    $region15: #{net_forward.1} parent=1 // pred_check_branch
      %553 = sbr.rel (0) target = $region17
    $region16: #{net_forward.1} parent=1 // pred_region
      _
    $region17: #{net_forward.1} parent=1 // pred_fallthru
      _
    // Predicated region
    $region18: #{net_forward.1} parent=1 // pred_check
      _
    $region19: #{net_forward.1} parent=1 // pred_check_branch
      %555 = sbr.rel (0) target = $region21
    $region20: #{net_forward.1} parent=1 // pred_region
      _
    $region21: #{net_forward.1} parent=1 // pred_fallthru
      _
    %556 = vsyncpa [#allocation3], 1

</llo_original>
